<compile_context>
chip_gen: v7x
topology: tpu7x:2x2x1
jax: 0.10.0
libtpu: 0.0.40
codegen_flags: <defaults>
</compile_context>

<pallas_src>
import jax
import jax.numpy as jnp
from jax.experimental import pallas as pl
from jax.experimental.pallas import tpu as pltpu

_LANES = 128


def _gelu2_kernel(x_ref, o_ref):
    # Compute in f32 regardless of I/O dtype; exp lands in the EUP slot, the
    # multiplies stay on the VPU -- both are free filler under the HBM roofline.
    x = x_ref[...].astype(jnp.float32)
    o_ref[...] = (x * jax.nn.sigmoid(1.702 * x)).astype(o_ref.dtype)


def _sublane(dtype):
    itemsize = jnp.dtype(dtype).itemsize
    if itemsize >= 4:
        return 8
    if itemsize == 2:
        return 16
    return 32


def _round_up(x, m):
    return -(-x // m) * m


def gelu2(x, block_rows=None):
    """GELU2: y = x * sigmoid(1.702 * x), applied elementwise (f32 / bf16 I/O)."""
    orig_shape = x.shape
    dtype = x.dtype
    itemsize = jnp.dtype(dtype).itemsize
    sublane = _sublane(dtype)

    flat = x.reshape(-1)
    n = flat.shape[0]
    if n == 0:
        return x

    # Lane-dense slab: last dim = 128 lanes.  Fast path (no pad, no extra HBM
    # traffic) whenever n is a multiple of 128; the reshape is a bitcast.
    if n % _LANES == 0:
        rows = n // _LANES
        padded = False
    else:
        # Rare ragged case: pad the tail to a whole 128-lane row.
        rows = -(-n // _LANES)
        flat = jnp.pad(flat, (0, rows * _LANES - n))
        padded = True
    x2 = flat.reshape(rows, _LANES)

    # --- Tile sizing -------------------------------------------------------
    if rows <= sublane:
        # Tiny input: one full-extent block (block dim == array dim is allowed
        # even below the (8,128) tile).
        block_rows = rows
    else:
        if block_rows is None:
            # ~2 MiB per buffer: >= ~85% of HBM roofline, and 2 arrays x
            # 2 buffers x 2 MiB = 8 MiB < 16 MiB v5e scoped-VMEM default
            # (also comfortable on v7x's 32 MiB scoped / 64 MiB physical).
            target_bytes = 2 * 1024 * 1024
            block_rows = max(sublane, target_bytes // (_LANES * itemsize))
        # Round to the dtype sublane multiple ((8,128) constraint on the block).
        block_rows = max(sublane, _round_up(int(block_rows), sublane))
        # Guarantee >= 2 grid steps so dimension_semantics=("parallel",) can
        # shard across both TensorCores on v7x.
        if block_rows >= rows:
            block_rows = _round_up(-(-rows // 2), sublane)

    grid = (pl.cdiv(rows, block_rows),)   # partial last block handled by Pallas masking

    out = pl.pallas_call(
        _gelu2_kernel,
        out_shape=jax.ShapeDtypeStruct((rows, _LANES), dtype),
        grid_spec=pltpu.PrefetchScalarGridSpec(
            num_scalar_prefetch=0,
            grid=grid,
            in_specs=[pl.BlockSpec((block_rows, _LANES), lambda i: (i, 0))],
            out_specs=pl.BlockSpec((block_rows, _LANES), lambda i: (i, 0)),
        ),
        compiler_params=pltpu.CompilerParams(
            dimension_semantics=("parallel",)),
        cost_estimate=pl.CostEstimate(
            flops=3 * rows * _LANES,
            transcendentals=rows * _LANES,
            bytes_accessed=2 * rows * _LANES * itemsize),
    )(x2)

    flat_out = out.reshape(-1)
    if padded:
        flat_out = flat_out[:n]
    return flat_out.reshape(orig_shape)


def _reference(x):
    """Pure-JAX reference of the PyTorch forward: x * sigmoid(1.702 * x)."""
    return x * jax.nn.sigmoid(1.702 * x)


if __name__ == "__main__":
    key = jax.random.PRNGKey(0)
    k1, k2, k3 = jax.random.split(key, 3)

    # Small shape consistent with a DiffusionTS MLP activation: (B, T, C).
    x_small = jax.random.normal(k1, (2, 8, 32), jnp.float32)
    y_small = gelu2(x_small)
    jax.block_until_ready(y_small)
    assert y_small.shape == x_small.shape and y_small.dtype == x_small.dtype
    assert jnp.allclose(y_small, _reference(x_small), atol=1e-5, rtol=1e-5)

    # Larger f32 case: n % 128 == 0 fast path, 2 grid steps, partial last block.
    x_big = jax.random.normal(k2, (4, 1000, 96), jnp.float32)
    y_big = gelu2(x_big)
    jax.block_until_ready(y_big)
    assert jnp.allclose(y_big, _reference(x_big), atol=1e-5, rtol=1e-5)

    # bf16 I/O path (f32 internal math, 16-row sublane alignment).
    x_bf16 = jax.random.normal(k3, (2, 256, 128), jnp.float32).astype(jnp.bfloat16)
    y_bf16 = gelu2(x_bf16)
    jax.block_until_ready(y_bf16)
    assert y_bf16.dtype == jnp.bfloat16
    assert jnp.allclose(y_bf16.astype(jnp.float32),
                        _reference(x_bf16.astype(jnp.float32)),
                        atol=2e-2, rtol=2e-2)

    print("KERNEL_OK")
</pallas_src>

<mosaic_0001>
module attributes {stable_mosaic.version = 11 : i64} {
  func.func @_gelu2_kernel(%arg0: i32, %arg1: memref<4x128xf32, #tpu.memory_space<vmem>>, %arg2: memref<4x128xf32, #tpu.memory_space<vmem>>) attributes {dimension_semantics = [#tpu.dimension_semantics<parallel>], iteration_bounds = array<i64: 1>, scalar_prefetch = 0 : i64, scratch_operands = 0 : i64, tpu.core_type = #tpu.core_type<tc>, window_params = [{transform_indices = @transform_0, window_bounds = array<i64: 4, 128>}, {transform_indices = @transform_1, window_bounds = array<i64: 4, 128>}]} {
    %c0 = arith.constant 0 : index
    %c0_0 = arith.constant 0 : index
    %0 = vector.load %arg1[%c0, %c0_0] : memref<4x128xf32, #tpu.memory_space<vmem>>, vector<4x128xf32>
    %cst = arith.constant 1.702000e+00 : f32
    %1 = vector.broadcast %cst : f32 to vector<4x128xf32>
    %2 = arith.mulf %1, %0 : vector<4x128xf32>
    %3 = arith.negf %2 : vector<4x128xf32>
    %4 = math.exp %3 : vector<4x128xf32>
    %cst_1 = arith.constant 1.000000e+00 : f32
    %5 = vector.broadcast %cst_1 : f32 to vector<4x128xf32>
    %6 = arith.addf %5, %4 : vector<4x128xf32>
    %7 = arith.divf %5, %6 : vector<4x128xf32>
    %8 = arith.mulf %0, %7 : vector<4x128xf32>
    %c0_2 = arith.constant 0 : index
    %c0_3 = arith.constant 0 : index
    %9 = vector.load %arg2[%c0_2, %c0_3] : memref<4x128xf32, #tpu.memory_space<vmem>>, vector<4x128xf32>
    tpu.vector_store %arg2[%c0_2, %c0_3], %8 {strides = array<i32>} : memref<4x128xf32, #tpu.memory_space<vmem>>, vector<4x128xf32>,
    return
  }
  func.func @transform_0(%arg0: i32) -> (i32, i32) {
    %c0_i32 = arith.constant 0 : i32
    %c0_i32_0 = arith.constant 0 : i32
    return %arg0, %c0_i32 : i32, i32
  }
  func.func @transform_1(%arg0: i32) -> (i32, i32) {
    %c0_i32 = arith.constant 0 : i32
    %c0_i32_0 = arith.constant 0 : i32
    return %arg0, %c0_i32 : i32, i32
  }
}

</mosaic_0001>

<llo_original>
// kernel: tpu_custom_call.1
$region0: #{tpu_custom_call.1}
  #allocation0 [shape = 'u32[]', space=smem, size = 0x4, offset = 0x4, fixed_abs, tag = 'smem constant byte address 0x4 - core index']
  #allocation1 [shape = 'u32[144,128]{1,0:T(1,128)}', space=vmem, size = 0x12000, scoped, tag = 'internal scratch']
  %s0 = inlined_call_operand.hbm [shape: f32[4,128], index: 0, kind: input, shape index: {}]
  %s1 = inlined_call_operand.hbm [shape: f32[4,128], index: 1, kind: output, shape index: {}]
  %s2 = sld [smem:[#allocation0]]
  $region18: #{tpu_custom_call.1} parent=0
    _
  %s4 = ssub.s32 1, %s2
  %s5 = scalar_select 0, %s4, %s2
  $region1: #{tpu_custom_call.1} parent=0
    #allocation2 [shape = 'u8[2048]{0}', space=vmem, size = 0x800, scoped, tag = 'input window, operand 0, single buffered']
    #allocation3 [shape = 's32[1]{0}', space=sflag, size = 0x4, scoped, tag = 'scoped memory for tpu_custom_call.1']
    #allocation4 [shape = 's32[1]{0}', space=sflag, size = 0x4, scoped, tag = 'scoped memory for tpu_custom_call.1']
    #allocation5 [shape = 'u8[2048]{0}', space=vmem, size = 0x800, scoped, tag = 'output window, operand 0, single buffered']
    %6 = vsyncpa [#allocation3], 0
    %7 = vsyncpa [#allocation4], 0
    // Predicated region
    $region2: #{tpu_custom_call.1} parent=1 // pred_check
      _
    $region3: #{tpu_custom_call.1} parent=1 // pred_check_branch
      %9 = sbr.rel (0) target = $region5
    $region4: #{tpu_custom_call.1} parent=1 // pred_region
      %s11 = ssub.s32 64, 64
      %12 = vsyncadd [#allocation3], %s11
      %s14 = sshll.u32 [#allocation2], 4
      %s15 = int_to_ptr.vmem [resolvable:$true] %s14
      %17 = dma.hbm_to_vmem [thread:$0]  %s0, 64, %s15, [#allocation3]
    $region5: #{tpu_custom_call.1} parent=1 // pred_fallthru
      _
    // Predicated region
    $region6: #{tpu_custom_call.1} parent=1 // pred_check
      _
    $region7: #{tpu_custom_call.1} parent=1 // pred_check_branch
      %19 = sbr.rel (0) target = $region9
    $region8: #{tpu_custom_call.1} parent=1 // pred_region
      %20 = dma.done [#allocation3], 64
    $region9: #{tpu_custom_call.1} parent=1 // pred_fallthru
      _
    %v21 = vld [vmem:[#allocation2] sm:$0xf]
    %v22 = vmul.f32 %v21, 1.702
    %v23 = vxor.u32 %v22, 2147483648
    %v24 = vmul.f32 %v23, 1.442695
    %v25 = vpow.pop %v24
    %v26 = vadd.f32 %v25, 1.0
    %v27 = vrcp.pop %v26
    %v28 = vmul.f32 1.0, %v27
    %v29 = vmul.f32 %v21, %v28
    %30 = vst [vmem:[#allocation5] sm:$0xf] %v29
    // Predicated region
    $region10: #{tpu_custom_call.1} parent=1 // pred_check
      _
    $region11: #{tpu_custom_call.1} parent=1 // pred_check_branch
      %32 = sbr.rel (0) target = $region13
    $region12: #{tpu_custom_call.1} parent=1 // pred_region
      %s34 = ssub.s32 64, 64
      %35 = vsyncadd [#allocation4], %s34
      %s37 = sshll.u32 [#allocation5], 4
      %s38 = int_to_ptr.vmem [resolvable:$true] %s37
      %40 = dma.vmem_to_hbm [thread:$0]  %s38, 64, %s1, [#allocation4]
    $region13: #{tpu_custom_call.1} parent=1 // pred_fallthru
      _
    // Predicated region
    $region14: #{tpu_custom_call.1} parent=1 // pred_check
      _
    $region15: #{tpu_custom_call.1} parent=1 // pred_check_branch
      %42 = sbr.rel (0) target = $region17
    $region16: #{tpu_custom_call.1} parent=1 // pred_region
      %43 = dma.done [#allocation4], 64
    $region17: #{tpu_custom_call.1} parent=1 // pred_fallthru
      _
    %44 = vsyncpa [#allocation3], 1
    %45 = vsyncpa [#allocation4], 1

</llo_original>
